<compile_context>
chip_gen: v7x
topology: tpu7x:2x2x1
jax: 0.10.0
libtpu: 0.0.40
codegen_flags: <defaults>
</compile_context>

<pallas_src>
import functools

import jax
import jax.numpy as jnp
from jax.experimental import pallas as pl
from jax.experimental.pallas import tpu as pltpu


def _conv2d_mm_kernel(xcol_ref, w_ref, b_ref, o_ref, *, BB):
    """One (batch-block, spatial-tile) grid step.

    xcol_ref: (BB, TSP, KKp)   pre-packed im2col tile (lane dim = KKp, 128-mult)
    w_ref:    (Cout, KKp)      tap-folded, zero-padded weights
    b_ref:    (Cout, 1)        f32 bias
    o_ref:    (BB, Cout, TSP)  lane-dense NCHW-flat output tile
    """
    w = w_ref[...]
    b = b_ref[...]
    for bb in range(BB):  # static unroll; independent matmuls, no relayouts
        # (Cout, KKp) contracted with (TSP, KKp) along KKp -> (Cout, TSP).
        acc = jax.lax.dot_general(
            w, xcol_ref[bb],
            dimension_numbers=(((1,), (1,)), ((), ())),
            preferred_element_type=jnp.float32)
        o_ref[bb] = (acc + b).astype(o_ref.dtype)


def _select_tiles(B, Cout, SP, KKp, in_bytes, out_bytes, budget_bytes):
    """VMEM-budget-driven tile selection (spatial tile + batch folding)."""

    def step_bytes(bb, tsp):
        xcol_blk = bb * tsp * KKp * in_bytes            # input tile
        out_blk = bb * Cout * tsp * out_bytes           # output tile
        acc = Cout * tsp * 4                            # transient f32 accumulator
        wgt = Cout * KKp * in_bytes + Cout * 128 * 4    # resident weights + bias
        return 2 * xcol_blk + 2 * out_blk + acc + wgt   # x2: double-buffered

    # Spatial tile: largest divisor of SP that is a 128-multiple (or SP itself)
    # whose step fits the budget.
    candidates = sorted({SP} | {t for t in range(128, SP, 128) if SP % t == 0},
                        reverse=True)
    tsp = None
    for t in candidates:
        if step_bytes(1, t) <= budget_bytes:
            tsp = t
            break
    if tsp is None:
        tsp = candidates[-1]
    n_sp = SP // tsp

    # Batch folding: only when each step is a single (small) spatial tile.
    bb = 1
    if n_sp == 1:
        min_steps = min(2, B)  # keep >=2 grid steps for megacore when possible
        for d in sorted((d for d in range(1, B + 1) if B % d == 0), reverse=True):
            if step_bytes(d, tsp) <= budget_bytes and (B // d) >= min_steps:
                bb = d
                break
    return bb, tsp, n_sp


def conv2d_wn(x_nchw, weight_oihw, bias, *, dilation_h=1, dilation_w=1,
              compute_dtype=jnp.bfloat16, out_dtype=jnp.float32,
              vmem_limit_bytes=32 * 1024 * 1024):
    """Forward pass of the PyTorch Conv2D module. (B,Cin,H,W) -> (B,Cout,H,W)."""
    B, Cin, H, W = x_nchw.shape
    Cout, Cin2, k, k2 = weight_oihw.shape
    assert Cin2 == Cin and k2 == k
    ph = dilation_h * (k - 1)
    pw = dilation_w * (k - 1) // 2
    # Symmetric-W-padding semantics only hold when dilation_w*(k-1) is even
    # (same restriction as the PyTorch module's symmetric padding).
    assert dilation_w * (k - 1) == 2 * pw, "dilation_w*(kernel_size-1) must be even"

    SP = H * W
    KK = k * k * Cin
    KKp = max(128, ((KK + 127) // 128) * 128)    # lane-dense contraction dim

    # ---- XLA-side glue (one fused pass over x in HBM): NCHW -> NHWC, causal
    # H pad (top only), symmetric W pad, cast, im2col tap gather, KK->KKp pad.
    x = jnp.transpose(x_nchw, (0, 2, 3, 1)).astype(compute_dtype)     # (B,H,W,Cin)
    x = jnp.pad(x, ((0, 0), (ph, 0), (pw, pw), (0, 0)))
    cols = [x[:, kh * dilation_h:kh * dilation_h + H,
              kw * dilation_w:kw * dilation_w + W, :]
            for kh in range(k) for kw in range(k)]                    # kh-major, kw, Cin-minor
    xcol = jnp.concatenate(cols, axis=-1).reshape(B, SP, KK)          # (B, H*W, KK)
    if KKp != KK:
        xcol = jnp.pad(xcol, ((0, 0), (0, 0), (0, KKp - KK)))
    # TODO(synk): for very large H*W the k^2 (+ KK->128 pad) HBM inflation of
    # wrapper-side im2col becomes a real cost; switch back to in-kernel halo
    # gathering with a manual double-buffered DMA there.

    # Tap-folded weights: OIHW -> (Cout, kh, kw, Cin) -> (Cout, KK) -> pad to KKp.
    w_packed = jnp.transpose(weight_oihw, (0, 2, 3, 1)).reshape(Cout, KK)
    if KKp != KK:
        w_packed = jnp.pad(w_packed, ((0, 0), (0, KKp - KK)))
    w_packed = w_packed.astype(compute_dtype)
    b2 = bias.reshape(Cout, 1).astype(jnp.float32)

    # ---- Tile selection from the VMEM budget (<= ~50% of scoped limit).
    in_bytes = jnp.dtype(compute_dtype).itemsize
    out_bytes = jnp.dtype(out_dtype).itemsize
    BB, TSP, n_sp = _select_tiles(B, Cout, SP, KKp, in_bytes, out_bytes,
                                  budget_bytes=vmem_limit_bytes // 2)
    grid_b = B // BB
    dims = ("parallel", "arbitrary") if grid_b >= 2 else ("parallel", "parallel")

    kernel = functools.partial(_conv2d_mm_kernel, BB=BB)
    out_flat = pl.pallas_call(
        kernel,
        out_shape=jax.ShapeDtypeStruct((B, Cout, SP), out_dtype),
        grid_spec=pltpu.PrefetchScalarGridSpec(
            num_scalar_prefetch=0,
            grid=(grid_b, n_sp),
            in_specs=[
                # Pre-packed im2col tile: lane dim KKp (128-multiple), disjoint
                # blocks per grid step (no duplicated input traffic across cores).
                pl.BlockSpec((BB, TSP, KKp), lambda b, t: (b, t, 0)),
                pl.BlockSpec((Cout, KKp), lambda b, t: (0, 0)),
                pl.BlockSpec((Cout, 1), lambda b, t: (0, 0)),
            ],
            # Lane-dense NCHW-flat output tile: last dim = TSP (128-multiple).
            out_specs=pl.BlockSpec((BB, Cout, TSP), lambda b, t: (b, 0, t)),
        ),
        compiler_params=pltpu.CompilerParams(
            dimension_semantics=dims,
            vmem_limit_bytes=vmem_limit_bytes),
    )(xcol, w_packed, b2)

    # (B, Cout, H*W) is NCHW already flattened -> free reshape, no transpose.
    return out_flat.reshape(B, Cout, H, W)


def make_params(key, in_channels, out_channels, kernel_size):
    """Deterministic synthetic params matching the module's __init__."""
    kv, kb = jax.random.split(key)
    fan_in = in_channels * kernel_size * kernel_size
    # kaiming_normal_ on v (weight_v); weight_norm init sets g = ||v||.
    v = jax.random.normal(kv, (out_channels, in_channels, kernel_size, kernel_size),
                          jnp.float32) * jnp.sqrt(2.0 / fan_in)
    v_norm = jnp.sqrt(jnp.sum(v * v, axis=(1, 2, 3), keepdims=True))
    g = v_norm
    weight = g * v / v_norm                       # weight-norm reparameterization
    bound = 1.0 / jnp.sqrt(fan_in)
    bias = jax.random.uniform(kb, (out_channels,), jnp.float32, -bound, bound)
    return weight, bias


if __name__ == "__main__":
    key = jax.random.PRNGKey(0)
    B, Cin, Cout, H, W, k = 2, 4, 8, 16, 16, 3
    dilation_h, dilation_w = 2, 1

    kp, kx = jax.random.split(key)
    weight, bias = make_params(kp, Cin, Cout, k)
    x = jax.random.normal(kx, (B, Cin, H, W), jnp.float32)

    out = conv2d_wn(x, weight, bias, dilation_h=dilation_h, dilation_w=dilation_w)
    out = jax.block_until_ready(out)

    # Reference: same PyTorch semantics via lax.conv_general_dilated + crop,
    # using the SAME bf16 operand rounding with f32 accumulation so the check
    # isolates kernel indexing/accumulation correctness.
    ph = dilation_h * (k - 1)
    pw = dilation_w * (k - 1) // 2
    ref = jax.lax.conv_general_dilated(
        x.astype(jnp.bfloat16), weight.astype(jnp.bfloat16),
        window_strides=(1, 1),
        padding=((ph, ph), (pw, pw)),
        rhs_dilation=(dilation_h, dilation_w),
        dimension_numbers=("NCHW", "OIHW", "NCHW"),
        preferred_element_type=jnp.float32)
    ref = ref + bias.reshape(1, Cout, 1, 1)
    if ph != 0:
        ref = ref[:, :, :-ph, :]

    assert out.shape == (B, Cout, H, W), out.shape
    err = float(jnp.max(jnp.abs(out - ref)))
    assert jnp.allclose(out, ref, atol=2e-3, rtol=2e-3), err
    print("KERNEL_OK")
</pallas_src>

<mosaic_0001>
module attributes {stable_mosaic.version = 11 : i64} {
  func.func @_conv2d_mm_kernel(%arg0: i32, %arg1: i32, %arg2: memref<1x256x128xbf16, #tpu.memory_space<vmem>>, %arg3: memref<8x128xbf16, #tpu.memory_space<vmem>>, %arg4: memref<8x1xf32, #tpu.memory_space<vmem>>, %arg5: memref<1x8x256xf32, #tpu.memory_space<vmem>>) attributes {dimension_semantics = [#tpu.dimension_semantics<parallel>, #tpu.dimension_semantics<arbitrary>], iteration_bounds = array<i64: 2, 1>, scalar_prefetch = 0 : i64, scratch_operands = 0 : i64, tpu.core_type = #tpu.core_type<tc>, window_params = [{transform_indices = @transform_0, window_bounds = array<i64: 1, 256, 128>}, {pipeline_mode = #tpu.pipeline_mode<synchronous>, transform_indices = @transform_1, window_bounds = array<i64: 8, 128>}, {pipeline_mode = #tpu.pipeline_mode<synchronous>, transform_indices = @transform_2, window_bounds = array<i64: 8, 1>}, {transform_indices = @transform_3, window_bounds = array<i64: 1, 8, 256>}]} {
    %c0 = arith.constant 0 : index
    %c0_0 = arith.constant 0 : index
    %0 = vector.load %arg3[%c0, %c0_0] : memref<8x128xbf16, #tpu.memory_space<vmem>>, vector<8x128xbf16>
    %c0_1 = arith.constant 0 : index
    %c0_2 = arith.constant 0 : index
    %1 = vector.load %arg4[%c0_1, %c0_2] : memref<8x1xf32, #tpu.memory_space<vmem>>, vector<8x1xf32>
    %c0_3 = arith.constant 0 : index
    %c0_4 = arith.constant 0 : index
    %c0_5 = arith.constant 0 : index
    %2 = vector.load %arg2[%c0_3, %c0_4, %c0_5] : memref<1x256x128xbf16, #tpu.memory_space<vmem>>, vector<1x256x128xbf16>
    %3 = vector.shape_cast %2 : vector<1x256x128xbf16> to vector<256x128xbf16>
    %cst = arith.constant dense<0.000000e+00> : vector<8x256xf32>
    %4 = tpu.matmul %0, %3, %cst {dimension_numbers = #tpu.dot_dimension_numbers<[1], [1], [0], [0], [0, 0, 1, 0], [], []>} : vector<8x128xbf16>, vector<256x128xbf16>, vector<8x256xf32> -> vector<8x256xf32>
    %5 = vector.broadcast %1 : vector<8x1xf32> to vector<8x256xf32>
    %6 = arith.addf %4, %5 : vector<8x256xf32>
    %c0_6 = arith.constant 0 : index
    %c0_7 = arith.constant 0 : index
    %c0_8 = arith.constant 0 : index
    %7 = vector.load %arg5[%c0_6, %c0_7, %c0_8] : memref<1x8x256xf32, #tpu.memory_space<vmem>>, vector<1x8x256xf32>
    %8 = vector.shape_cast %7 : vector<1x8x256xf32> to vector<8x256xf32>
    %9 = vector.shape_cast %6 : vector<8x256xf32> to vector<1x8x256xf32>
    tpu.vector_store %arg5[%c0_6, %c0_7, %c0_8], %9 {strides = array<i32>} : memref<1x8x256xf32, #tpu.memory_space<vmem>>, vector<1x8x256xf32>,
    return
  }
  func.func @transform_0(%arg0: i32, %arg1: i32) -> (i32, i32, i32) {
    %c0_i32 = arith.constant 0 : i32
    %c0_i32_0 = arith.constant 0 : i32
    return %arg0, %arg1, %c0_i32 : i32, i32, i32
  }
  func.func @transform_1(%arg0: i32, %arg1: i32) -> (i32, i32) {
    %c0_i32 = arith.constant 0 : i32
    %c0_i32_0 = arith.constant 0 : i32
    %c0_i32_1 = arith.constant 0 : i32
    return %c0_i32, %c0_i32_0 : i32, i32
  }
  func.func @transform_2(%arg0: i32, %arg1: i32) -> (i32, i32) {
    %c0_i32 = arith.constant 0 : i32
    %c0_i32_0 = arith.constant 0 : i32
    %c0_i32_1 = arith.constant 0 : i32
    return %c0_i32, %c0_i32_0 : i32, i32
  }
  func.func @transform_3(%arg0: i32, %arg1: i32) -> (i32, i32, i32) {
    %c0_i32 = arith.constant 0 : i32
    %c0_i32_0 = arith.constant 0 : i32
    return %arg0, %c0_i32, %arg1 : i32, i32, i32
  }
}

</mosaic_0001>

<llo_original>
// kernel: tpu_custom_call.1
$region0: #{tpu_custom_call.1}
  #allocation0 [shape = 'u32[]', space=smem, size = 0x4, offset = 0x4, fixed_abs, tag = 'smem constant byte address 0x4 - core index']
  #allocation1 [shape = 'u32[144,128]{1,0:T(1,128)}', space=vmem, size = 0x12000, scoped, tag = 'internal scratch']
  %s0 = inlined_call_operand.hbm [shape: bf16[2,256,128], index: 0, kind: input, shape index: {}]
  %s1 = inlined_call_operand.vmem [shape: bf16[8,128], index: 1, kind: input, shape index: {}]
  %s2 = inlined_call_operand.vmem [shape: f32[8,1], index: 2, kind: input, shape index: {}]
  %s3 = inlined_call_operand.hbm [shape: f32[2,8,256], index: 3, kind: output, shape index: {}]
  %s4 = sld [smem:[#allocation0]]
  $region49: #{tpu_custom_call.1} parent=0
    _
  %s6 = ssub.s32 1, %s4
  %s7 = scalar_select 0, %s6, %s4
  $region1: #{tpu_custom_call.1} parent=0
    #allocation2 [shape = 'u8[131072]{0}', space=vmem, size = 0x20000, scoped, tag = 'input window, operand 0']
    #allocation3 [shape = 's32[2]{0}', space=sflag, size = 0x8, scoped, tag = 'scoped memory for tpu_custom_call.1']
    #allocation4 [shape = 's32[2]{0}', space=sflag, size = 0x8, scoped, tag = 'scoped memory for tpu_custom_call.1']
    #allocation5 [shape = 'u8[16384]{0}', space=vmem, size = 0x4000, scoped, tag = 'output window, operand 0']
    %8 = vsyncpa [#allocation3], 0
    %s9 = scalar_lea.sflag [#allocation3], 1
    %10 = vsyncpa %s9, 0
    %11 = vsyncpa [#allocation4], 0
    %s12 = scalar_lea.sflag [#allocation4], 1
    %13 = vsyncpa %s12, 0
    loop: start=0, step=1, limit=4
    $region2: #{tpu_custom_call.1} parent=1 // loop_pre_header
      _
    $region3: #{tpu_custom_call.1} parent=1 // loop_header
      %s15 = sphi 0, %s19
      %p16 = scmp.ge.s32.totalorder %s15, 4
      %s22 = sphi 0, %s34
      %s23 = sphi 0, %s30
      %s24 = sphi 0, %s22
      %s25 = sphi 0, %s23
      %s26 = sphi 0, %s24
      %s27 = sphi 0, %s25
      %s39 = sphi 0, %s41
      %s42 = sphi 0, %s39
      %s43 = sphi 0, %s42
      %s59 = sphi 0, %s43
      %s63 = sphi 0, %s63
      %s65 = sphi 0, %s63
      %s66 = sphi 0, %s65
      %s80 = sphi 0, %s66
      %s84 = sphi 0, %s84
      %s86 = sphi 0, %s84
      %s87 = sphi 0, %s86
      %s101 = sphi 0, %s87
      %s109 = sphi 0, %s111
      %s112 = sphi 0, %s109
      %s113 = sphi 0, %s112
      %s129 = sphi 0, %s113
    $region4: #{tpu_custom_call.1} parent=1 // loop_header_branch
      %18 = sbr.rel (%p16) target = $region8
    $region5: #{tpu_custom_call.1} parent=1 // loop_body
      %s20 = ssub.s32 %s15, 1
      %s21 = ssub.s32 %s15, 2
      %s28 = sadd.s32 1, %s23
      %p29 = scmp.ge.s32.totalorder %s28, 1
      %s30 = scalar_select %p29, 0, %s28
      %s31 = sadd.s32 1, %s22
      %s32 = scalar_select %p29, %s31, %s22
      %p33 = scmp.ge.s32.totalorder %s32, 2
      %s34 = scalar_select %p33, 0, %s32
      %s35 = ssub.s32 %s22, %s34
      %s36 = ssub.s32 %s23, %s30
      %s37 = sor.u32 %s35, %s36
      %p38 = scmp.eq.s32.totalorder %s37, 0
      %s40 = sadd.s32 %s39, 1
      %s41 = scalar_select %p38, %s39, %s40
      %p44 = pneg %p38
      %p45 = scmp.eq.s32.totalorder %s15, 1
      %p46 = por %p44, %p45
      %p47 = scmp.ne.s32.totalorder %s39, %s42
      %p48 = scmp.eq.s32.totalorder %s15, 0
      %p49 = por %p47, %p48
      %p50 = scmp.ne.s32.totalorder %s39, %s42
      %p51 = scmp.eq.s32.totalorder %s20, 1
      %p52 = por %p50, %p51
      %p53 = scmp.ne.s32.totalorder %s42, %s43
      %p54 = scmp.eq.s32.totalorder %s20, 0
      %p55 = por %p53, %p54
      %p56 = scmp.ne.s32.totalorder %s42, %s43
      %p57 = scmp.eq.s32.totalorder %s21, 1
      %p58 = por %p56, %p57
      %p60 = scmp.ne.s32.totalorder %s43, %s59
      %p61 = scmp.eq.s32.totalorder %s21, 0
      %p62 = por %p60, %p61
      %s64 = sadd.s32 %s63, 1
      %p67 = scmp.eq.s32.totalorder %s15, 1
      %p68 = scmp.ne.s32.totalorder %s63, %s65
      %p69 = scmp.eq.s32.totalorder %s15, 0
      %p70 = por %p68, %p69
      %p71 = scmp.ne.s32.totalorder %s63, %s65
      %p72 = scmp.eq.s32.totalorder %s20, 1
      %p73 = por %p71, %p72
      %p74 = scmp.ne.s32.totalorder %s65, %s66
      %p75 = scmp.eq.s32.totalorder %s20, 0
      %p76 = por %p74, %p75
      %p77 = scmp.ne.s32.totalorder %s65, %s66
      %p78 = scmp.eq.s32.totalorder %s21, 1
      %p79 = por %p77, %p78
      %p81 = scmp.ne.s32.totalorder %s66, %s80
      %p82 = scmp.eq.s32.totalorder %s21, 0
      %p83 = por %p81, %p82
      %s85 = sadd.s32 %s84, 1
      %p88 = scmp.eq.s32.totalorder %s15, 1
      %p89 = scmp.ne.s32.totalorder %s84, %s86
      %p90 = scmp.eq.s32.totalorder %s15, 0
      %p91 = por %p89, %p90
      %p92 = scmp.ne.s32.totalorder %s84, %s86
      %p93 = scmp.eq.s32.totalorder %s20, 1
      %p94 = por %p92, %p93
      %p95 = scmp.ne.s32.totalorder %s86, %s87
      %p96 = scmp.eq.s32.totalorder %s20, 0
      %p97 = por %p95, %p96
      %p98 = scmp.ne.s32.totalorder %s86, %s87
      %p99 = scmp.eq.s32.totalorder %s21, 1
      %p100 = por %p98, %p99
      %p102 = scmp.ne.s32.totalorder %s87, %s101
      %p103 = scmp.eq.s32.totalorder %s21, 0
      %p104 = por %p102, %p103
      %s105 = ssub.s32 %s22, %s34
      %s106 = ssub.s32 %s23, %s30
      %s107 = sor.u32 %s105, %s106
      %p108 = scmp.eq.s32.totalorder %s107, 0
      %s110 = sadd.s32 %s109, 1
      %s111 = scalar_select %p108, %s109, %s110
      %p114 = pneg %p108
      %p115 = scmp.eq.s32.totalorder %s15, 1
      %p116 = por %p114, %p115
      %p117 = scmp.ne.s32.totalorder %s109, %s112
      %p118 = scmp.eq.s32.totalorder %s15, 0
      %p119 = por %p117, %p118
      %p120 = scmp.ne.s32.totalorder %s109, %s112
      %p121 = scmp.eq.s32.totalorder %s20, 1
      %p122 = por %p120, %p121
      %p123 = scmp.ne.s32.totalorder %s112, %s113
      %p124 = scmp.eq.s32.totalorder %s20, 0
      %p125 = por %p123, %p124
      %p126 = scmp.ne.s32.totalorder %s112, %s113
      %p127 = scmp.eq.s32.totalorder %s21, 1
      %p128 = por %p126, %p127
      %p130 = scmp.ne.s32.totalorder %s113, %s129
      %p131 = scmp.eq.s32.totalorder %s21, 0
      %p132 = por %p130, %p131
      %p133 = scmp.le.s32.totalorder 1, %s15
      %p134 = scmp.lt.s32.totalorder %s15, 3
      %p135 = pnand %p133, %p134
      %p136 = pneg %p135
      // Predicated region
      $region9: #{tpu_custom_call.1} parent=5 // pred_check
        _
      $region10: #{tpu_custom_call.1} parent=5 // pred_check_branch
        %138 = sbr.rel (%p135) target = $region12
      $region11: #{tpu_custom_call.1} parent=5 // pred_region
        %s139 = ssub.s32 %s15, 1
        // Predicated region
        $region13: #{tpu_custom_call.1} parent=11 // pred_check
          %p140 = pneg %p76
        $region14: #{tpu_custom_call.1} parent=11 // pred_check_branch
          %142 = sbr.rel (%p140) target = $region16
        $region15: #{tpu_custom_call.1} parent=11 // pred_region
          _
        $region16: #{tpu_custom_call.1} parent=11 // pred_fallthru
          _
        // Predicated region
        $region17: #{tpu_custom_call.1} parent=11 // pred_check
          %p143 = pneg %p97
        $region18: #{tpu_custom_call.1} parent=11 // pred_check_branch
          %145 = sbr.rel (%p143) target = $region20
        $region19: #{tpu_custom_call.1} parent=11 // pred_region
          _
        $region20: #{tpu_custom_call.1} parent=11 // pred_fallthru
          _
      $region12: #{tpu_custom_call.1} parent=5 // pred_fallthru
        _
      %p146 = scmp.lt.s32.totalorder %s15, 2
      // Predicated region
      $region21: #{tpu_custom_call.1} parent=5 // pred_check
        %p147 = pneg %p146
      $region22: #{tpu_custom_call.1} parent=5 // pred_check_branch
        %149 = sbr.rel (%p147) target = $region24
      $region23: #{tpu_custom_call.1} parent=5 // pred_region
        // Predicated region
        $region25: #{tpu_custom_call.1} parent=23 // pred_check
          %p150 = pneg %p49
        $region26: #{tpu_custom_call.1} parent=23 // pred_check_branch
          %152 = sbr.rel (%p150) target = $region28
        $region27: #{tpu_custom_call.1} parent=23 // pred_region
          %s153 = sand.u32 %s39, 1
          %s154 = scalar_lea.sflag [#allocation3], %s153
          %s155 = sand.u32 %s39, 1
          %s156 = smul.addr %s155, 128
          %s157 = scalar_lea.vmem [#allocation2], %s156
          %s158 = smul.u32 32, %s23
          %s160 = ssub.s32 2048, 2048
          %161 = vsyncadd %s154, %s160
          %s162 = smul.addr %s22, 32
          %s163 = sadd.s32 %s158, %s162
          %s164 = smul.addr %s163, 64
          %s165 = scalar_lea.hbm %s0, %s164
          %s166 = sshll.u32 %s157, 4
          %s167 = int_to_ptr.vmem [resolvable:$true] %s166
          %172 = dma.hbm_to_vmem [thread:$0]  %s165, 2048, %s167, %s154, 64, 64, 4
        $region28: #{tpu_custom_call.1} parent=23 // pred_fallthru
          _
      $region24: #{tpu_custom_call.1} parent=5 // pred_fallthru
        _
      %p173 = scmp.le.s32.totalorder 1, %s15
      %p174 = scmp.lt.s32.totalorder %s15, 3
      %p175 = pnand %p173, %p174
      %p176 = pneg %p175
      // Predicated region
      $region29: #{tpu_custom_call.1} parent=5 // pred_check
        _
      $region30: #{tpu_custom_call.1} parent=5 // pred_check_branch
        %178 = sbr.rel (%p175) target = $region32
      $region31: #{tpu_custom_call.1} parent=5 // pred_region
        %s179 = ssub.s32 %s15, 1
        %s180 = sand.u32 %s42, 1
        %s181 = scalar_lea.sflag [#allocation3], %s180
        %s182 = sand.u32 %s42, 1
        %s183 = smul.addr %s182, 128
        %s184 = scalar_lea.vmem [#allocation2], %s183
        // Predicated region
        $region33: #{tpu_custom_call.1} parent=31 // pred_check
          %p185 = pneg %p55
        $region34: #{tpu_custom_call.1} parent=31 // pred_check_branch
          %187 = sbr.rel (%p185) target = $region36
        $region35: #{tpu_custom_call.1} parent=31 // pred_region
          %188 = dma.done %s181, 2048
        $region36: #{tpu_custom_call.1} parent=31 // pred_fallthru
          _
        %s189 = sand.u32 %s42, 1
        %s190 = scalar_lea.sflag [#allocation3], %s189
        %s191 = sand.u32 %s42, 1
        %s192 = smul.addr %s191, 128
        %s193 = scalar_lea.vmem [#allocation2], %s192
        %p194 = pneg %p55
        %p195 = pneg %p52
        %p196 = pneg %p76
        %p197 = pneg %p73
        %p198 = pneg %p97
        %p199 = pneg %p94
        %p200 = pneg %p125
        %p201 = pneg %p122
        %s202 = sand.u32 %s112, 1
        %s203 = scalar_lea.sflag [#allocation4], %s202
        %s204 = sand.u32 %s112, 1
        %s205 = smul.addr %s204, 16
        %s206 = scalar_lea.vmem [#allocation5], %s205
        %s207 = smul.u32 32, %s25
        %s208 = smul.u32 2, %s25
        %v210 = vld [vmem:[%s1] sm:$0xf]
        %v211 = vld [vmem:[%s2] sm:$0xff]
        %v212 = vld [vmem:[%s184] sm:$0xf]
        %v213 = vld [vmem:[%s184 + $0x4] sm:$0xf]
        %v214 = vld [vmem:[%s184 + $0x8] sm:$0xf]
        %v215 = vld [vmem:[%s184 + $0xc] sm:$0xf]
        %v216 = vld [vmem:[%s184 + $0x10] sm:$0xf]
        %v217 = vld [vmem:[%s184 + $0x14] sm:$0xf]
        %v218 = vld [vmem:[%s184 + $0x18] sm:$0xf]
        %v219 = vld [vmem:[%s184 + $0x1c] sm:$0xf]
        %v220 = vld [vmem:[%s184 + $0x20] sm:$0xf]
        %v221 = vld [vmem:[%s184 + $0x24] sm:$0xf]
        %v222 = vld [vmem:[%s184 + $0x28] sm:$0xf]
        %v223 = vld [vmem:[%s184 + $0x2c] sm:$0xf]
        %v224 = vld [vmem:[%s184 + $0x30] sm:$0xf]
        %v225 = vld [vmem:[%s184 + $0x34] sm:$0xf]
        %v226 = vld [vmem:[%s184 + $0x38] sm:$0xf]
        %v227 = vld [vmem:[%s184 + $0x3c] sm:$0xf]
        %v228 = vld [vmem:[%s184 + $0x40] sm:$0xf]
        %v229 = vld [vmem:[%s184 + $0x44] sm:$0xf]
        %v230 = vld [vmem:[%s184 + $0x48] sm:$0xf]
        %v231 = vld [vmem:[%s184 + $0x4c] sm:$0xf]
        %v232 = vld [vmem:[%s184 + $0x50] sm:$0xf]
        %v233 = vld [vmem:[%s184 + $0x54] sm:$0xf]
        %v234 = vld [vmem:[%s184 + $0x58] sm:$0xf]
        %v235 = vld [vmem:[%s184 + $0x5c] sm:$0xf]
        %v236 = vld [vmem:[%s184 + $0x60] sm:$0xf]
        %v237 = vld [vmem:[%s184 + $0x64] sm:$0xf]
        %v238 = vld [vmem:[%s184 + $0x68] sm:$0xf]
        %v239 = vld [vmem:[%s184 + $0x6c] sm:$0xf]
        %v240 = vld [vmem:[%s184 + $0x70] sm:$0xf]
        %v241 = vld [vmem:[%s184 + $0x74] sm:$0xf]
        %v242 = vld [vmem:[%s184 + $0x78] sm:$0xf]
        %v243 = vld [vmem:[%s184 + $0x7c] sm:$0xf]
        %245 = vset.pattern.permute.xlu0 0
        %246 = vperm.xlu0 %245, %v211
        %v247 = vpop.permute.xlu0 %246
        %v281 = vunpack.c.l.b16 %v212
        %v282 = vunpack.c.l.b16 %v213
        %v283 = vunpack.c.l.b16 %v214
        %v284 = vunpack.c.l.b16 %v215
        %v285 = vunpack.c.l.b16 %v216
        %v286 = vunpack.c.l.b16 %v217
        %v287 = vunpack.c.l.b16 %v218
        %v288 = vunpack.c.l.b16 %v219
        %v289 = vunpack.c.l.b16 %v220
        %v290 = vunpack.c.l.b16 %v221
        %v291 = vunpack.c.l.b16 %v222
        %v292 = vunpack.c.l.b16 %v223
        %v293 = vunpack.c.l.b16 %v224
        %v294 = vunpack.c.l.b16 %v225
        %v295 = vunpack.c.l.b16 %v226
        %v296 = vunpack.c.l.b16 %v227
        %v297 = vunpack.c.l.b16 %v228
        %v298 = vunpack.c.l.b16 %v229
        %v299 = vunpack.c.l.b16 %v230
        %v300 = vunpack.c.l.b16 %v231
        %v301 = vunpack.c.l.b16 %v232
        %v302 = vunpack.c.l.b16 %v233
        %v303 = vunpack.c.l.b16 %v234
        %v304 = vunpack.c.l.b16 %v235
        %v305 = vunpack.c.l.b16 %v236
        %v306 = vunpack.c.l.b16 %v237
        %v307 = vunpack.c.l.b16 %v238
        %v308 = vunpack.c.l.b16 %v239
        %v309 = vunpack.c.l.b16 %v240
        %v310 = vunpack.c.l.b16 %v241
        %v311 = vunpack.c.l.b16 %v242
        %v312 = vunpack.c.l.b16 %v243
        %v313 = vpack.c.b16 %v282, %v281
        %v314 = vpack.c.b16 %v284, %v283
        %v315 = vpack.c.b16 %v286, %v285
        %v316 = vpack.c.b16 %v288, %v287
        %v317 = vpack.c.b16 %v290, %v289
        %v318 = vpack.c.b16 %v292, %v291
        %v319 = vpack.c.b16 %v294, %v293
        %v320 = vpack.c.b16 %v296, %v295
        %v321 = vpack.c.b16 %v298, %v297
        %v322 = vpack.c.b16 %v300, %v299
        %v323 = vpack.c.b16 %v302, %v301
        %v324 = vpack.c.b16 %v304, %v303
        %v325 = vpack.c.b16 %v306, %v305
        %v326 = vpack.c.b16 %v308, %v307
        %v327 = vpack.c.b16 %v310, %v309
        %v328 = vpack.c.b16 %v312, %v311
        %345 = vmatprep.subr.bf16.mxu0 0
        %346 = vmatpush1.bf16.xpose.msra.mxu0 %v313
        %347 = vmatprep.subr.bf16.mxu0 0
        %348 = vmatpush1.bf16.xpose.msra.mxu0 %v314
        %349 = vmatprep.subr.bf16.mxu0 0
        %350 = vmatpush1.bf16.xpose.msra.mxu0 %v315
        %351 = vmatprep.subr.bf16.mxu0 0
        %352 = vmatpush1.bf16.xpose.msra.mxu0 %v316
        %353 = vmatprep.subr.bf16.mxu0 0
        %354 = vmatpush1.bf16.xpose.msra.mxu0 %v317
        %355 = vmatprep.subr.bf16.mxu0 0
        %356 = vmatpush1.bf16.xpose.msra.mxu0 %v318
        %357 = vmatprep.subr.bf16.mxu0 0
        %358 = vmatpush1.bf16.xpose.msra.mxu0 %v319
        %359 = vmatprep.subr.bf16.mxu0 0
        %360 = vmatpush1.bf16.xpose.msra.mxu0 %v320
        %361 = vmatprep.subr.bf16.mxu0 0
        %362 = vmatpush1.bf16.xpose.msra.mxu0 %v321
        %363 = vmatprep.subr.bf16.mxu0 0
        %364 = vmatpush1.bf16.xpose.msra.mxu0 %v322
        %365 = vmatprep.subr.bf16.mxu0 0
        %366 = vmatpush1.bf16.xpose.msra.mxu0 %v323
        %367 = vmatprep.subr.bf16.mxu0 0
        %368 = vmatpush1.bf16.xpose.msra.mxu0 %v324
        %369 = vmatprep.subr.bf16.mxu0 0
        %370 = vmatpush1.bf16.xpose.msra.mxu0 %v325
        %371 = vmatprep.subr.bf16.mxu0 0
        %372 = vmatpush1.bf16.xpose.msra.mxu0 %v326
        %373 = vmatprep.subr.bf16.mxu0 0
        %374 = vmatpush1.bf16.xpose.msra.mxu0 %v327
        %375 = vmatprep.subr.bf16.mxu0 0
        %376 = vmatpush1.bf16.xpose.msra.mxu0 %v328
        %377 = vmatprep.mubr.bf16.mxu0 0
        %378 = vmatmul.mubr.bf16.gmra.mrb[0].mxu0 %v210
        %v379 = vpop.f32.mrb[0].mxu0
        %v380 = vadd.f32 %v247, %v379
        %v381 = vpop.f32.mrb[0].mxu0
        %v382 = vadd.f32 %v247, %v381
        %v383 = vpop.f32.mrb[0].mxu0
        %v384 = vpop.f32.mrb[0].mxu0
        %385 = vdwg.mxu0
        %386 = vst [vmem:[%s206] sm:$0xff] %v380
        %387 = vst [vmem:[%s206 + $0x8] sm:$0xff] %v382
        %s388 = sand.u32 %s112, 1
        %s389 = scalar_lea.sflag [#allocation4], %s388
        %s390 = sand.u32 %s112, 1
        %s391 = smul.addr %s390, 16
        %s392 = scalar_lea.vmem [#allocation5], %s391
        // Predicated region
        $region37: #{tpu_custom_call.1} parent=31 // pred_check
          %p393 = pneg %p122
        $region38: #{tpu_custom_call.1} parent=31 // pred_check_branch
          %395 = sbr.rel (%p393) target = $region40
        $region39: #{tpu_custom_call.1} parent=31 // pred_region
          %s396 = smul.u32 2, %s25
          %s398 = ssub.s32 256, 256
          %399 = vsyncadd %s389, %s398
          %s400 = smul.addr %s24, 2
          %s401 = sadd.s32 %s396, %s400
          %s402 = smul.addr %s401, 128
          %s403 = scalar_lea.hbm %s3, %s402
          %s405 = sshll.u32 %s392, 4
          %s406 = int_to_ptr.vmem [resolvable:$true] %s405
          %408 = dma.vmem_to_hbm [thread:$0]  %s406, 256, %s403, %s389
        $region40: #{tpu_custom_call.1} parent=31 // pred_fallthru
          _
      $region32: #{tpu_custom_call.1} parent=5 // pred_fallthru
        _
      %p409 = scmp.le.s32.totalorder 2, %s15
      // Predicated region
      $region41: #{tpu_custom_call.1} parent=5 // pred_check
        %p410 = pneg %p409
      $region42: #{tpu_custom_call.1} parent=5 // pred_check_branch
        %412 = sbr.rel (%p410) target = $region44
      $region43: #{tpu_custom_call.1} parent=5 // pred_region
        %s413 = ssub.s32 %s15, 2
        // Predicated region
        $region45: #{tpu_custom_call.1} parent=43 // pred_check
          %p414 = pneg %p128
        $region46: #{tpu_custom_call.1} parent=43 // pred_check_branch
          %416 = sbr.rel (%p414) target = $region48
        $region47: #{tpu_custom_call.1} parent=43 // pred_region
          %s417 = sand.u32 %s113, 1
          %s418 = scalar_lea.sflag [#allocation4], %s417
          %s419 = sand.u32 %s113, 1
          %s420 = smul.addr %s419, 16
          %s421 = scalar_lea.vmem [#allocation5], %s420
          %422 = dma.done %s418, 256
        $region48: #{tpu_custom_call.1} parent=43 // pred_fallthru
          _
      $region44: #{tpu_custom_call.1} parent=5 // pred_fallthru
        _
    $region6: #{tpu_custom_call.1} parent=1 // loop_footer
      %s19 = sadd.s32 1, %s15
    $region7: #{tpu_custom_call.1} parent=1 // loop_footer_branch
      %14 = sbr.rel target = $region3
    $region8: #{tpu_custom_call.1} parent=1 // loop_exit
      _
    %423 = vsyncpa [#allocation3], 1
    %s424 = scalar_lea.sflag [#allocation3], 1
    %425 = vsyncpa %s424, 1
    %426 = vsyncpa [#allocation4], 1
    %s427 = scalar_lea.sflag [#allocation4], 1
    %428 = vsyncpa %s427, 1

</llo_original>
